<compile_context>
chip_gen: v5e
topology: v5e:2x2
jax: 0.10.0
libtpu: 0.0.40
codegen_flags: <defaults>
</compile_context>

<pallas_src>
import jax
import jax.numpy as jnp
from jax import lax
from jax.experimental import pallas as pl
from jax.experimental.pallas import tpu as pltpu

LN_EPS = 1e-5


# --------------------------------------------------------------------------- #
# Kernel
# --------------------------------------------------------------------------- #
def gated_fusion_kernel(f1_ref, f2_ref, wa_ref, wb_ref, bias_ref,
                        gamma_ref, beta_ref, o_ref):
    H = o_ref.shape[-1]

    f1 = f1_ref[...].astype(jnp.float32)
    f2 = f2_ref[...].astype(jnp.float32)

    # Fused gate projections: z = [z1 | z2], shape (tile_b, 2H).
    # MXU takes bf16 operands, accumulates in f32 (preferred_element_type).
    mx_dtype = wa_ref.dtype
    z = (jnp.dot(f1_ref[...].astype(mx_dtype), wa_ref[...],
                 preferred_element_type=jnp.float32)
         + jnp.dot(f2_ref[...].astype(mx_dtype), wb_ref[...],
                   preferred_element_type=jnp.float32)
         + bias_ref[...])
    g = jax.nn.sigmoid(z)

    # Gated sum in f32 (H is lane-tile aligned for the slices).
    fused = f1 * g[:, :H] + f2 * g[:, H:]

    # LayerNorm over the hidden (lane) axis, all in f32.
    mean = jnp.mean(fused, axis=-1, keepdims=True)
    centered = fused - mean
    var = jnp.mean(centered * centered, axis=-1, keepdims=True)
    normed = centered * lax.rsqrt(var + LN_EPS)

    o_ref[...] = (normed * gamma_ref[...] + beta_ref[...]).astype(o_ref.dtype)


# --------------------------------------------------------------------------- #
# Wrapper
# --------------------------------------------------------------------------- #
def _choose_tile_b(batch, requested):
    if batch <= requested:
        return batch                    # one full-batch tile (block == array dim)
    tb = requested
    # Keep at least 2 grid steps so both v7x TensorCores get work; never drop
    # below 128 rows (MXU M saturation on v5e; half-fill on v6e/v7x).
    while batch // tb < 2 and tb > 128:
        tb //= 2
    return tb


def gated_fusion(ftrs1, ftrs2, params, *, tile_b=256):
    """ftrs1, ftrs2: (B, H).  params: packed dict from pack_params()."""
    B, H = ftrs1.shape
    tb = _choose_tile_b(B, tile_b)
    Bp = pl.cdiv(B, tb) * tb
    if Bp != B:                          # pad batch to a tile multiple
        pad = ((0, Bp - B), (0, 0))
        ftrs1 = jnp.pad(ftrs1, pad)
        ftrs2 = jnp.pad(ftrs2, pad)

    wa, wb = params["wa"], params["wb"]

    act_spec = pl.BlockSpec((tb, H), lambda i: (i, 0))
    # Constant-index operands are fetched exactly once -> single-buffer them
    # (halves the weight VMEM footprint vs. the default double-buffering).
    w_spec = pl.BlockSpec((H, 2 * H), lambda i: (0, 0),
                          pipeline_mode=pl.Buffered(1))
    b_spec = pl.BlockSpec((1, 2 * H), lambda i: (0, 0),
                          pipeline_mode=pl.Buffered(1))
    v_spec = pl.BlockSpec((1, H), lambda i: (0, 0),
                          pipeline_mode=pl.Buffered(1))

    act_bytes = ftrs1.dtype.itemsize
    vmem_need = (
        2 * (H * 2 * H) * wa.dtype.itemsize      # Wa + Wb (single-buffered, bf16)
        + 2 * 2 * tb * H * act_bytes             # f1, f2 tiles (double-buffered)
        + 2 * tb * H * act_bytes                 # output tiles (double-buffered)
        + 8 * tb * 2 * H * 4                     # f32 temporaries headroom
        + (4 << 20))                             # compiler scratch margin
    vmem_limit = int(min(max(vmem_need, 32 << 20), 64 << 20))

    out = pl.pallas_call(
        gated_fusion_kernel,
        out_shape=jax.ShapeDtypeStruct((Bp, H), ftrs1.dtype),
        grid_spec=pltpu.PrefetchScalarGridSpec(
            num_scalar_prefetch=0,
            grid=(Bp // tb,),
            in_specs=[act_spec, act_spec,
                      w_spec, w_spec, b_spec,
                      v_spec, v_spec],
            out_specs=act_spec,
        ),
        compiler_params=pltpu.CompilerParams(
            dimension_semantics=("parallel",),
            vmem_limit_bytes=vmem_limit),
    )(ftrs1, ftrs2, wa, wb, params["bias"], params["gamma"], params["beta"])

    return out[:B]


# --------------------------------------------------------------------------- #
# Parameters (PyTorch layout + packing for the kernel)
# --------------------------------------------------------------------------- #
def make_params(key, hdim):
    """PyTorch-layout GatedFusion parameters (f32, for the reference)."""
    k1, k2, k3, k4 = jax.random.split(key, 4)
    bound = 1.0 / jnp.sqrt(2.0 * hdim)
    return {
        "w1": jax.random.uniform(k1, (hdim, 2 * hdim), jnp.float32, -bound, bound),
        "b1": jax.random.uniform(k3, (hdim,), jnp.float32, -bound, bound),
        "w2": jax.random.uniform(k2, (hdim, 2 * hdim), jnp.float32, -bound, bound),
        "b2": jax.random.uniform(k4, (hdim,), jnp.float32, -bound, bound),
        "gamma": jnp.ones((hdim,), jnp.float32),
        "beta": jnp.zeros((hdim,), jnp.float32),
    }


def pack_params(p, *, weight_dtype=jnp.bfloat16):
    """Transpose (out,in)->(in,out), split along 'in', and fuse the two gates
    along the output axis: Wa = [W1a|W2a], Wb = [W1b|W2b], each (H, 2H)."""
    hdim = p["w1"].shape[0]
    w1t, w2t = p["w1"].T, p["w2"].T                       # (2H, H)
    wa = jnp.concatenate([w1t[:hdim], w2t[:hdim]], axis=1).astype(weight_dtype)
    wb = jnp.concatenate([w1t[hdim:], w2t[hdim:]], axis=1).astype(weight_dtype)
    bias = jnp.concatenate([p["b1"], p["b2"]])[None, :].astype(jnp.float32)
    return {
        "wa": wa, "wb": wb, "bias": bias,
        "gamma": p["gamma"][None, :].astype(jnp.float32),
        "beta": p["beta"][None, :].astype(jnp.float32),
    }


# --------------------------------------------------------------------------- #
# References
# --------------------------------------------------------------------------- #
def gated_fusion_ref(f1, f2, p):
    """Pure-f32 math matching the PyTorch module."""
    cat = jnp.concatenate([f1, f2], axis=1)
    g1 = jax.nn.sigmoid(cat @ p["w1"].T + p["b1"])
    g2 = jax.nn.sigmoid(cat @ p["w2"].T + p["b2"])
    fused = f1 * g1 + f2 * g2
    mean = fused.mean(-1, keepdims=True)
    var = ((fused - mean) ** 2).mean(-1, keepdims=True)
    return (fused - mean) * lax.rsqrt(var + LN_EPS) * p["gamma"] + p["beta"]


def gated_fusion_matched_ref(f1, f2, packed):
    """Reference matching the kernel's bf16-operand / f32-accumulate precision."""
    H = packed["gamma"].shape[-1]
    f1m = f1.astype(packed["wa"].dtype).astype(jnp.float32)
    f2m = f2.astype(packed["wb"].dtype).astype(jnp.float32)
    z = (f1m @ packed["wa"].astype(jnp.float32)
         + f2m @ packed["wb"].astype(jnp.float32) + packed["bias"])
    g = jax.nn.sigmoid(z)
    fused = f1 * g[:, :H] + f2 * g[:, H:]
    mean = fused.mean(-1, keepdims=True)
    var = ((fused - mean) ** 2).mean(-1, keepdims=True)
    return (fused - mean) * lax.rsqrt(var + LN_EPS) * packed["gamma"] + packed["beta"]


# --------------------------------------------------------------------------- #
if __name__ == "__main__":
    B, H = 16, 128   # small synthetic shapes (module default hdim=768 also works)
    key = jax.random.PRNGKey(0)
    kf1, kf2, kp = jax.random.split(key, 3)
    ftrs1 = jax.random.normal(kf1, (B, H), jnp.float32)
    ftrs2 = jax.random.normal(kf2, (B, H), jnp.float32)

    torch_params = make_params(kp, H)
    packed = pack_params(torch_params)

    out = gated_fusion(ftrs1, ftrs2, packed)
    jax.block_until_ready(out)

    # Tight check vs. a reference with identical bf16-matmul precision.
    matched = gated_fusion_matched_ref(ftrs1, ftrs2, packed)
    assert jnp.allclose(out, matched, atol=1e-3, rtol=1e-3), "mismatch vs matched ref"

    # Looser check vs. full-f32 PyTorch-equivalent math (bf16 MXU operands are
    # the only approximation).
    ref = gated_fusion_ref(ftrs1, ftrs2, torch_params)
    assert jnp.allclose(out, ref, atol=2e-2, rtol=2e-2), "mismatch vs f32 ref"

    print("KERNEL_OK")
</pallas_src>

<mosaic_0001>
module attributes {stable_mosaic.version = 11 : i64} {
  func.func @gated_fusion_kernel(%arg0: i32, %arg1: memref<16x128xf32, #tpu.memory_space<vmem>>, %arg2: memref<16x128xf32, #tpu.memory_space<vmem>>, %arg3: memref<128x256xbf16, #tpu.memory_space<vmem>>, %arg4: memref<128x256xbf16, #tpu.memory_space<vmem>>, %arg5: memref<1x256xf32, #tpu.memory_space<vmem>>, %arg6: memref<1x128xf32, #tpu.memory_space<vmem>>, %arg7: memref<1x128xf32, #tpu.memory_space<vmem>>, %arg8: memref<16x128xf32, #tpu.memory_space<vmem>>) attributes {dimension_semantics = [#tpu.dimension_semantics<parallel>], iteration_bounds = array<i64: 1>, scalar_prefetch = 0 : i64, scratch_operands = 0 : i64, tpu.core_type = #tpu.core_type<tc>, window_params = [{transform_indices = @transform_0, window_bounds = array<i64: 16, 128>}, {transform_indices = @transform_1, window_bounds = array<i64: 16, 128>}, {pipeline_mode = #tpu.pipeline_mode<synchronous>, transform_indices = @transform_2, window_bounds = array<i64: 128, 256>}, {pipeline_mode = #tpu.pipeline_mode<synchronous>, transform_indices = @transform_3, window_bounds = array<i64: 128, 256>}, {pipeline_mode = #tpu.pipeline_mode<synchronous>, transform_indices = @transform_4, window_bounds = array<i64: 1, 256>}, {pipeline_mode = #tpu.pipeline_mode<synchronous>, transform_indices = @transform_5, window_bounds = array<i64: 1, 128>}, {pipeline_mode = #tpu.pipeline_mode<synchronous>, transform_indices = @transform_6, window_bounds = array<i64: 1, 128>}, {transform_indices = @transform_7, window_bounds = array<i64: 16, 128>}]} {
    %c0 = arith.constant 0 : index
    %c0_0 = arith.constant 0 : index
    %0 = vector.load %arg1[%c0, %c0_0] : memref<16x128xf32, #tpu.memory_space<vmem>>, vector<16x128xf32>
    %c0_1 = arith.constant 0 : index
    %c0_2 = arith.constant 0 : index
    %1 = vector.load %arg2[%c0_1, %c0_2] : memref<16x128xf32, #tpu.memory_space<vmem>>, vector<16x128xf32>
    %c0_3 = arith.constant 0 : index
    %c0_4 = arith.constant 0 : index
    %2 = vector.load %arg1[%c0_3, %c0_4] : memref<16x128xf32, #tpu.memory_space<vmem>>, vector<16x128xf32>
    %3 = arith.truncf %2 : vector<16x128xf32> to vector<16x128xbf16>
    %c0_5 = arith.constant 0 : index
    %c0_6 = arith.constant 0 : index
    %4 = vector.load %arg3[%c0_5, %c0_6] : memref<128x256xbf16, #tpu.memory_space<vmem>>, vector<128x256xbf16>
    %cst = arith.constant dense<0.000000e+00> : vector<16x256xf32>
    %5 = tpu.matmul %3, %4, %cst {dimension_numbers = #tpu.dot_dimension_numbers<[1], [0], [0], [1], [0, 0, 1, 1], [], []>} : vector<16x128xbf16>, vector<128x256xbf16>, vector<16x256xf32> -> vector<16x256xf32>
    %c0_7 = arith.constant 0 : index
    %c0_8 = arith.constant 0 : index
    %6 = vector.load %arg2[%c0_7, %c0_8] : memref<16x128xf32, #tpu.memory_space<vmem>>, vector<16x128xf32>
    %7 = arith.truncf %6 : vector<16x128xf32> to vector<16x128xbf16>
    %c0_9 = arith.constant 0 : index
    %c0_10 = arith.constant 0 : index
    %8 = vector.load %arg4[%c0_9, %c0_10] : memref<128x256xbf16, #tpu.memory_space<vmem>>, vector<128x256xbf16>
    %cst_11 = arith.constant dense<0.000000e+00> : vector<16x256xf32>
    %9 = tpu.matmul %7, %8, %cst_11 {dimension_numbers = #tpu.dot_dimension_numbers<[1], [0], [0], [1], [0, 0, 1, 1], [], []>} : vector<16x128xbf16>, vector<128x256xbf16>, vector<16x256xf32> -> vector<16x256xf32>
    %10 = arith.addf %5, %9 : vector<16x256xf32>
    %c0_12 = arith.constant 0 : index
    %c0_13 = arith.constant 0 : index
    %11 = vector.load %arg5[%c0_12, %c0_13] : memref<1x256xf32, #tpu.memory_space<vmem>>, vector<1x256xf32>
    %12 = vector.broadcast %11 : vector<1x256xf32> to vector<16x256xf32>
    %13 = arith.addf %10, %12 : vector<16x256xf32>
    %14 = arith.negf %13 : vector<16x256xf32>
    %15 = math.exp %14 : vector<16x256xf32>
    %cst_14 = arith.constant 1.000000e+00 : f32
    %16 = vector.broadcast %cst_14 : f32 to vector<16x256xf32>
    %17 = arith.addf %16, %15 : vector<16x256xf32>
    %18 = arith.divf %16, %17 : vector<16x256xf32>
    %19 = vector.extract_strided_slice %18 {offsets = [0, 0], sizes = [16, 128], strides = [1, 1]} : vector<16x256xf32> to vector<16x128xf32>
    %20 = arith.mulf %0, %19 : vector<16x128xf32>
    %21 = vector.extract_strided_slice %18 {offsets = [0, 128], sizes = [16, 128], strides = [1, 1]} : vector<16x256xf32> to vector<16x128xf32>
    %22 = arith.mulf %1, %21 : vector<16x128xf32>
    %23 = arith.addf %20, %22 : vector<16x128xf32>
    %cst_15 = arith.constant dense<0.000000e+00> : vector<16xf32>
    %24 = vector.multi_reduction <add>, %23, %cst_15 [1] : vector<16x128xf32> to vector<16xf32>
    %25 = vector.shape_cast %24 : vector<16xf32> to vector<16x1xf32>
    %cst_16 = arith.constant 1.280000e+02 : f32
    %26 = vector.broadcast %cst_16 : f32 to vector<16x1xf32>
    %27 = arith.divf %25, %26 : vector<16x1xf32>
    %28 = vector.broadcast %27 : vector<16x1xf32> to vector<16x128xf32>
    %29 = arith.subf %23, %28 : vector<16x128xf32>
    %30 = arith.mulf %29, %29 : vector<16x128xf32>
    %cst_17 = arith.constant dense<0.000000e+00> : vector<16xf32>
    %31 = vector.multi_reduction <add>, %30, %cst_17 [1] : vector<16x128xf32> to vector<16xf32>
    %32 = vector.shape_cast %31 : vector<16xf32> to vector<16x1xf32>
    %cst_18 = arith.constant 1.280000e+02 : f32
    %33 = vector.broadcast %cst_18 : f32 to vector<16x1xf32>
    %34 = arith.divf %32, %33 : vector<16x1xf32>
    %cst_19 = arith.constant 9.99999974E-6 : f32
    %35 = vector.broadcast %cst_19 : f32 to vector<16x1xf32>
    %36 = arith.addf %34, %35 : vector<16x1xf32>
    %37 = math.rsqrt %36 : vector<16x1xf32>
    %38 = vector.broadcast %37 : vector<16x1xf32> to vector<16x128xf32>
    %39 = arith.mulf %29, %38 : vector<16x128xf32>
    %c0_20 = arith.constant 0 : index
    %c0_21 = arith.constant 0 : index
    %40 = vector.load %arg6[%c0_20, %c0_21] : memref<1x128xf32, #tpu.memory_space<vmem>>, vector<1x128xf32>
    %41 = vector.broadcast %40 : vector<1x128xf32> to vector<16x128xf32>
    %42 = arith.mulf %39, %41 : vector<16x128xf32>
    %c0_22 = arith.constant 0 : index
    %c0_23 = arith.constant 0 : index
    %43 = vector.load %arg7[%c0_22, %c0_23] : memref<1x128xf32, #tpu.memory_space<vmem>>, vector<1x128xf32>
    %44 = vector.broadcast %43 : vector<1x128xf32> to vector<16x128xf32>
    %45 = arith.addf %42, %44 : vector<16x128xf32>
    %c0_24 = arith.constant 0 : index
    %c0_25 = arith.constant 0 : index
    %46 = vector.load %arg8[%c0_24, %c0_25] : memref<16x128xf32, #tpu.memory_space<vmem>>, vector<16x128xf32>
    tpu.vector_store %arg8[%c0_24, %c0_25], %45 {strides = array<i32>} : memref<16x128xf32, #tpu.memory_space<vmem>>, vector<16x128xf32>,
    return
  }
  func.func @transform_0(%arg0: i32) -> (i32, i32) {
    %c0_i32 = arith.constant 0 : i32
    %c0_i32_0 = arith.constant 0 : i32
    return %arg0, %c0_i32 : i32, i32
  }
  func.func @transform_1(%arg0: i32) -> (i32, i32) {
    %c0_i32 = arith.constant 0 : i32
    %c0_i32_0 = arith.constant 0 : i32
    return %arg0, %c0_i32 : i32, i32
  }
  func.func @transform_2(%arg0: i32) -> (i32, i32) {
    %c0_i32 = arith.constant 0 : i32
    %c0_i32_0 = arith.constant 0 : i32
    %c0_i32_1 = arith.constant 0 : i32
    return %c0_i32, %c0_i32_0 : i32, i32
  }
  func.func @transform_3(%arg0: i32) -> (i32, i32) {
    %c0_i32 = arith.constant 0 : i32
    %c0_i32_0 = arith.constant 0 : i32
    %c0_i32_1 = arith.constant 0 : i32
    return %c0_i32, %c0_i32_0 : i32, i32
  }
  func.func @transform_4(%arg0: i32) -> (i32, i32) {
    %c0_i32 = arith.constant 0 : i32
    %c0_i32_0 = arith.constant 0 : i32
    %c0_i32_1 = arith.constant 0 : i32
    return %c0_i32, %c0_i32_0 : i32, i32
  }
  func.func @transform_5(%arg0: i32) -> (i32, i32) {
    %c0_i32 = arith.constant 0 : i32
    %c0_i32_0 = arith.constant 0 : i32
    %c0_i32_1 = arith.constant 0 : i32
    return %c0_i32, %c0_i32_0 : i32, i32
  }
  func.func @transform_6(%arg0: i32) -> (i32, i32) {
    %c0_i32 = arith.constant 0 : i32
    %c0_i32_0 = arith.constant 0 : i32
    %c0_i32_1 = arith.constant 0 : i32
    return %c0_i32, %c0_i32_0 : i32, i32
  }
  func.func @transform_7(%arg0: i32) -> (i32, i32) {
    %c0_i32 = arith.constant 0 : i32
    %c0_i32_0 = arith.constant 0 : i32
    return %arg0, %c0_i32 : i32, i32
  }
}

</mosaic_0001>

<llo_original>
// kernel: tpu_custom_call.1
$region0: #{tpu_custom_call.1}
  #allocation0 [shape = 'u32[]', space=smem, size = 0x4, offset = 0x4, fixed_abs, tag = 'smem constant byte address 0x4 - core index']
  #allocation1 [shape = 'u32[72,128]{1,0:T(1,128)}', space=vmem, size = 0x9000, scoped, tag = 'internal scratch']
  %s0 = inlined_call_operand.hbm [shape: f32[16,128], index: 0, kind: input, shape index: {}]
  %s1 = inlined_call_operand.hbm [shape: f32[16,128], index: 1, kind: input, shape index: {}]
  %s2 = inlined_call_operand.hbm [shape: bf16[128,256], index: 2, kind: input, shape index: {}]
  %s3 = inlined_call_operand.hbm [shape: bf16[128,256], index: 3, kind: input, shape index: {}]
  %s4 = inlined_call_operand.vmem [shape: f32[1,256], index: 4, kind: input, shape index: {}]
  %s5 = inlined_call_operand.vmem [shape: f32[1,128], index: 5, kind: input, shape index: {}]
  %s6 = inlined_call_operand.vmem [shape: f32[1,128], index: 6, kind: input, shape index: {}]
  %s7 = inlined_call_operand.hbm [shape: f32[16,128], index: 7, kind: output, shape index: {}]
  %s8 = sld [smem:[#allocation0]]
  $region54: #{tpu_custom_call.1} parent=0
    _
  %s10 = ssub.s32 1, %s8
  %s11 = scalar_select 0, %s10, %s8
  $region1: #{tpu_custom_call.1} parent=0
    #allocation2 [shape = 'u8[8192]{0}', space=vmem, size = 0x2000, scoped, tag = 'input window, operand 0, single buffered']
    #allocation3 [shape = 's32[1]{0}', space=sflag, size = 0x4, scoped, tag = 'scoped memory for tpu_custom_call.1']
    #allocation4 [shape = 's32[1]{0}', space=sflag, size = 0x4, scoped, tag = 'scoped memory for tpu_custom_call.1']
    #allocation5 [shape = 'u8[8192]{0}', space=vmem, size = 0x2000, scoped, tag = 'input window, operand 1, single buffered']
    #allocation6 [shape = 's32[1]{0}', space=sflag, size = 0x4, scoped, tag = 'scoped memory for tpu_custom_call.1']
    #allocation7 [shape = 'u8[65536]{0}', space=vmem, size = 0x10000, scoped, tag = 'input window, operand 2, single buffered']
    #allocation8 [shape = 'u8[65536]{0}', space=vmem, size = 0x10000, scoped, tag = 'input window, operand 3, single buffered']
    #allocation9 [shape = 's32[1]{0}', space=sflag, size = 0x4, scoped, tag = 'scoped memory for tpu_custom_call.1']
    #allocation10 [shape = 'u8[8192]{0}', space=vmem, size = 0x2000, scoped, tag = 'output window, operand 0, single buffered']
    %12 = vsyncpa [#allocation3], 0
    %13 = vsyncpa [#allocation6], 0
    %14 = vsyncpa [#allocation9], 0
    %15 = vsyncpa [#allocation4], 0
    // Predicated region
    $region2: #{tpu_custom_call.1} parent=1 // pred_check
      _
    $region3: #{tpu_custom_call.1} parent=1 // pred_check_branch
      %17 = sbr.rel (0) target = $region5
    $region4: #{tpu_custom_call.1} parent=1 // pred_region
      %19 = vsyncadd [#allocation3], 0
      %s20 = sshll.u32 %s0, 4
      %s21 = int_to_ptr.hbm [resolvable:$true] %s20
      %s22 = sshll.u32 [#allocation2], 4
      %s23 = int_to_ptr.vmem [resolvable:$true] %s22
      %28 = dma.hbm_to_vmem [thread:$0]  %s21, 256, %s23, [#allocation3], 128, 128, 8
    $region5: #{tpu_custom_call.1} parent=1 // pred_fallthru
      _
    // Predicated region
    $region6: #{tpu_custom_call.1} parent=1 // pred_check
      _
    $region7: #{tpu_custom_call.1} parent=1 // pred_check_branch
      %30 = sbr.rel (0) target = $region9
    $region8: #{tpu_custom_call.1} parent=1 // pred_region
      %32 = vsyncadd [#allocation6], 0
      %s33 = sshll.u32 %s1, 4
      %s34 = int_to_ptr.hbm [resolvable:$true] %s33
      %s35 = sshll.u32 [#allocation5], 4
      %s36 = int_to_ptr.vmem [resolvable:$true] %s35
      %41 = dma.hbm_to_vmem [thread:$0]  %s34, 256, %s36, [#allocation6], 128, 128, 8
    $region9: #{tpu_custom_call.1} parent=1 // pred_fallthru
      _
    // Predicated region
    $region10: #{tpu_custom_call.1} parent=1 // pred_check
      _
    $region11: #{tpu_custom_call.1} parent=1 // pred_check_branch
      %43 = sbr.rel (0) target = $region13
    $region12: #{tpu_custom_call.1} parent=1 // pred_region
      %45 = vsyncadd [#allocation6], 0
      %s46 = sshll.u32 %s2, 4
      %s47 = int_to_ptr.hbm [resolvable:$true] %s46
      %s48 = sshll.u32 [#allocation7], 4
      %s49 = int_to_ptr.vmem [resolvable:$true] %s48
      %54 = dma.hbm_to_vmem [thread:$0]  %s47, 2048, %s49, [#allocation6], 128, 128, 8
    $region13: #{tpu_custom_call.1} parent=1 // pred_fallthru
      _
    // Predicated region
    $region14: #{tpu_custom_call.1} parent=1 // pred_check
      _
    $region15: #{tpu_custom_call.1} parent=1 // pred_check_branch
      %56 = sbr.rel (0) target = $region17
    $region16: #{tpu_custom_call.1} parent=1 // pred_region
      %58 = vsyncadd [#allocation9], 0
      %s59 = sshll.u32 %s3, 4
      %s60 = int_to_ptr.hbm [resolvable:$true] %s59
      %s61 = sshll.u32 [#allocation8], 4
      %s62 = int_to_ptr.vmem [resolvable:$true] %s61
      %67 = dma.hbm_to_vmem [thread:$0]  %s60, 2048, %s62, [#allocation9], 128, 128, 8
    $region17: #{tpu_custom_call.1} parent=1 // pred_fallthru
      _
    // Predicated region
    $region18: #{tpu_custom_call.1} parent=1 // pred_check
      _
    $region19: #{tpu_custom_call.1} parent=1 // pred_check_branch
      %69 = sbr.rel (0) target = $region21
    $region20: #{tpu_custom_call.1} parent=1 // pred_region
      _
    $region21: #{tpu_custom_call.1} parent=1 // pred_fallthru
      _
    // Predicated region
    $region22: #{tpu_custom_call.1} parent=1 // pred_check
      _
    $region23: #{tpu_custom_call.1} parent=1 // pred_check_branch
      %71 = sbr.rel (0) target = $region25
    $region24: #{tpu_custom_call.1} parent=1 // pred_region
      _
    $region25: #{tpu_custom_call.1} parent=1 // pred_fallthru
      _
    // Predicated region
    $region26: #{tpu_custom_call.1} parent=1 // pred_check
      _
    $region27: #{tpu_custom_call.1} parent=1 // pred_check_branch
      %73 = sbr.rel (0) target = $region29
    $region28: #{tpu_custom_call.1} parent=1 // pred_region
      _
    $region29: #{tpu_custom_call.1} parent=1 // pred_fallthru
      _
    // Predicated region
    $region30: #{tpu_custom_call.1} parent=1 // pred_check
      _
    $region31: #{tpu_custom_call.1} parent=1 // pred_check_branch
      %75 = sbr.rel (0) target = $region33
    $region32: #{tpu_custom_call.1} parent=1 // pred_region
      %77 = dma.done [#allocation3], 256
    $region33: #{tpu_custom_call.1} parent=1 // pred_fallthru
      _
    // Predicated region
    $region34: #{tpu_custom_call.1} parent=1 // pred_check
      _
    $region35: #{tpu_custom_call.1} parent=1 // pred_check_branch
      %79 = sbr.rel (0) target = $region37
    $region36: #{tpu_custom_call.1} parent=1 // pred_region
      %81 = dma.done [#allocation6], 256
    $region37: #{tpu_custom_call.1} parent=1 // pred_fallthru
      _
    // Predicated region
    $region38: #{tpu_custom_call.1} parent=1 // pred_check
      _
    $region39: #{tpu_custom_call.1} parent=1 // pred_check_branch
      %83 = sbr.rel (0) target = $region41
    $region40: #{tpu_custom_call.1} parent=1 // pred_region
      %85 = dma.done [#allocation6], 2048
    $region41: #{tpu_custom_call.1} parent=1 // pred_fallthru
      _
    // Predicated region
    $region42: #{tpu_custom_call.1} parent=1 // pred_check
      _
    $region43: #{tpu_custom_call.1} parent=1 // pred_check_branch
      %87 = sbr.rel (0) target = $region45
    $region44: #{tpu_custom_call.1} parent=1 // pred_region
      %89 = dma.done [#allocation9], 2048
    $region45: #{tpu_custom_call.1} parent=1 // pred_fallthru
      _
    %v90 = vld [vmem:[#allocation2] sm:$0xff]
    %v91 = vld [vmem:[#allocation2 + $0x8] sm:$0xff]
    %v92 = vld [vmem:[#allocation5] sm:$0xff]
    %v93 = vld [vmem:[#allocation5 + $0x8] sm:$0xff]
    %v94 = vpack.c.bf16 %v91, %v90
    %v95 = vld [vmem:[#allocation7] sm:$0xff]
    %v96 = vld [vmem:[#allocation7 + $0x8] sm:$0xff]
    %v97 = vld [vmem:[#allocation7 + $0x10] sm:$0xff]
    %v98 = vld [vmem:[#allocation7 + $0x18] sm:$0xff]
    %v99 = vld [vmem:[#allocation7 + $0x20] sm:$0xff]
    %v100 = vld [vmem:[#allocation7 + $0x28] sm:$0xff]
    %v101 = vld [vmem:[#allocation7 + $0x30] sm:$0xff]
    %v102 = vld [vmem:[#allocation7 + $0x38] sm:$0xff]
    %v103 = vld [vmem:[#allocation7 + $0x40] sm:$0xff]
    %v104 = vld [vmem:[#allocation7 + $0x48] sm:$0xff]
    %v105 = vld [vmem:[#allocation7 + $0x50] sm:$0xff]
    %v106 = vld [vmem:[#allocation7 + $0x58] sm:$0xff]
    %v107 = vld [vmem:[#allocation7 + $0x60] sm:$0xff]
    %v108 = vld [vmem:[#allocation7 + $0x68] sm:$0xff]
    %v109 = vld [vmem:[#allocation7 + $0x70] sm:$0xff]
    %v110 = vld [vmem:[#allocation7 + $0x78] sm:$0xff]
    %v111 = vpack.c.bf16 %v93, %v92
    %v112 = vld [vmem:[#allocation8] sm:$0xff]
    %v113 = vld [vmem:[#allocation8 + $0x8] sm:$0xff]
    %v114 = vld [vmem:[#allocation8 + $0x10] sm:$0xff]
    %v115 = vld [vmem:[#allocation8 + $0x18] sm:$0xff]
    %v116 = vld [vmem:[#allocation8 + $0x20] sm:$0xff]
    %v117 = vld [vmem:[#allocation8 + $0x28] sm:$0xff]
    %v118 = vld [vmem:[#allocation8 + $0x30] sm:$0xff]
    %v119 = vld [vmem:[#allocation8 + $0x38] sm:$0xff]
    %v120 = vld [vmem:[#allocation8 + $0x40] sm:$0xff]
    %v121 = vld [vmem:[#allocation8 + $0x48] sm:$0xff]
    %v122 = vld [vmem:[#allocation8 + $0x50] sm:$0xff]
    %v123 = vld [vmem:[#allocation8 + $0x58] sm:$0xff]
    %v124 = vld [vmem:[#allocation8 + $0x60] sm:$0xff]
    %v125 = vld [vmem:[#allocation8 + $0x68] sm:$0xff]
    %v126 = vld [vmem:[#allocation8 + $0x70] sm:$0xff]
    %v127 = vld [vmem:[#allocation8 + $0x78] sm:$0xff]
    %v144 = vunpack.c.l.b16 %v112
    %v145 = vunpack.c.h.b16 %v112
    %v146 = vunpack.c.l.b16 %v113
    %v147 = vunpack.c.h.b16 %v113
    %v148 = vunpack.c.l.b16 %v114
    %v149 = vunpack.c.h.b16 %v114
    %v150 = vunpack.c.l.b16 %v115
    %v151 = vunpack.c.h.b16 %v115
    %v152 = vunpack.c.l.b16 %v116
    %v153 = vunpack.c.h.b16 %v116
    %v154 = vunpack.c.l.b16 %v117
    %v155 = vunpack.c.h.b16 %v117
    %v156 = vunpack.c.l.b16 %v118
    %v157 = vunpack.c.h.b16 %v118
    %v158 = vunpack.c.l.b16 %v119
    %v159 = vunpack.c.h.b16 %v119
    %v160 = vunpack.c.l.b16 %v120
    %v161 = vunpack.c.h.b16 %v120
    %v162 = vunpack.c.l.b16 %v121
    %v163 = vunpack.c.h.b16 %v121
    %v164 = vunpack.c.l.b16 %v122
    %v165 = vunpack.c.h.b16 %v122
    %v166 = vunpack.c.l.b16 %v123
    %v167 = vunpack.c.h.b16 %v123
    %v168 = vunpack.c.l.b16 %v124
    %v169 = vunpack.c.h.b16 %v124
    %v170 = vunpack.c.l.b16 %v125
    %v171 = vunpack.c.h.b16 %v125
    %v172 = vunpack.c.l.b16 %v126
    %v173 = vunpack.c.h.b16 %v126
    %v174 = vunpack.c.l.b16 %v127
    %v175 = vunpack.c.h.b16 %v127
    %v176 = vpack.c.b16 %v146, %v144
    %v177 = vpack.c.b16 %v147, %v145
    %v178 = vpack.c.b16 %v150, %v148
    %v179 = vpack.c.b16 %v151, %v149
    %v180 = vpack.c.b16 %v154, %v152
    %v181 = vpack.c.b16 %v155, %v153
    %v182 = vpack.c.b16 %v158, %v156
    %v183 = vpack.c.b16 %v159, %v157
    %v184 = vpack.c.b16 %v162, %v160
    %v185 = vpack.c.b16 %v163, %v161
    %v186 = vpack.c.b16 %v166, %v164
    %v187 = vpack.c.b16 %v167, %v165
    %v188 = vpack.c.b16 %v170, %v168
    %v189 = vpack.c.b16 %v171, %v169
    %v190 = vpack.c.b16 %v174, %v172
    %v191 = vpack.c.b16 %v175, %v173
    %208 = vmatpush.bf16.msra.mxu0 %v190
    %209 = vmatpush.bf16.msra.mxu0 %v188
    %210 = vmatpush.bf16.msra.mxu0 %v186
    %211 = vmatpush.bf16.msra.mxu0 %v184
    %212 = vmatpush.bf16.msra.mxu0 %v182
    %213 = vmatpush.bf16.msra.mxu0 %v180
    %214 = vmatpush.bf16.msra.mxu0 %v178
    %215 = vmatpush.bf16.msra.mxu0 %v176
    %216 = vmatmul.bf16.gmra.mxu0 %v111
    %v217 = vpop.f32.mrf.mxu0
    %v218 = vadd.f32 0.0, %v217
    %v219 = vpop.f32.mrf.mxu0
    %v220 = vadd.f32 0.0, %v219
    %221 = vdwg.mxu0
    %222 = vmatpush.bf16.msra.mxu0 %v191
    %223 = vmatpush.bf16.msra.mxu0 %v189
    %224 = vmatpush.bf16.msra.mxu0 %v187
    %225 = vmatpush.bf16.msra.mxu0 %v185
    %226 = vmatpush.bf16.msra.mxu0 %v183
    %227 = vmatpush.bf16.msra.mxu0 %v181
    %228 = vmatpush.bf16.msra.mxu0 %v179
    %229 = vmatpush.bf16.msra.mxu0 %v177
    %230 = vmatmul.bf16.gmra.mxu0 %v111
    %v231 = vpop.f32.mrf.mxu0
    %v232 = vadd.f32 0.0, %v231
    %v233 = vpop.f32.mrf.mxu0
    %v234 = vadd.f32 0.0, %v233
    %235 = vdwg.mxu0
    %v252 = vunpack.c.l.b16 %v95
    %v253 = vunpack.c.h.b16 %v95
    %v254 = vunpack.c.l.b16 %v96
    %v255 = vunpack.c.h.b16 %v96
    %v256 = vunpack.c.l.b16 %v97
    %v257 = vunpack.c.h.b16 %v97
    %v258 = vunpack.c.l.b16 %v98
    %v259 = vunpack.c.h.b16 %v98
    %v260 = vunpack.c.l.b16 %v99
    %v261 = vunpack.c.h.b16 %v99
    %v262 = vunpack.c.l.b16 %v100
    %v263 = vunpack.c.h.b16 %v100
    %v264 = vunpack.c.l.b16 %v101
    %v265 = vunpack.c.h.b16 %v101
    %v266 = vunpack.c.l.b16 %v102
    %v267 = vunpack.c.h.b16 %v102
    %v268 = vunpack.c.l.b16 %v103
    %v269 = vunpack.c.h.b16 %v103
    %v270 = vunpack.c.l.b16 %v104
    %v271 = vunpack.c.h.b16 %v104
    %v272 = vunpack.c.l.b16 %v105
    %v273 = vunpack.c.h.b16 %v105
    %v274 = vunpack.c.l.b16 %v106
    %v275 = vunpack.c.h.b16 %v106
    %v276 = vunpack.c.l.b16 %v107
    %v277 = vunpack.c.h.b16 %v107
    %v278 = vunpack.c.l.b16 %v108
    %v279 = vunpack.c.h.b16 %v108
    %v280 = vunpack.c.l.b16 %v109
    %v281 = vunpack.c.h.b16 %v109
    %v282 = vunpack.c.l.b16 %v110
    %v283 = vunpack.c.h.b16 %v110
    %v284 = vpack.c.b16 %v254, %v252
    %v285 = vpack.c.b16 %v255, %v253
    %v286 = vpack.c.b16 %v258, %v256
    %v287 = vpack.c.b16 %v259, %v257
    %v288 = vpack.c.b16 %v262, %v260
    %v289 = vpack.c.b16 %v263, %v261
    %v290 = vpack.c.b16 %v266, %v264
    %v291 = vpack.c.b16 %v267, %v265
    %v292 = vpack.c.b16 %v270, %v268
    %v293 = vpack.c.b16 %v271, %v269
    %v294 = vpack.c.b16 %v274, %v272
    %v295 = vpack.c.b16 %v275, %v273
    %v296 = vpack.c.b16 %v278, %v276
    %v297 = vpack.c.b16 %v279, %v277
    %v298 = vpack.c.b16 %v282, %v280
    %v299 = vpack.c.b16 %v283, %v281
    %316 = vmatpush.bf16.msra.mxu0 %v298
    %317 = vmatpush.bf16.msra.mxu0 %v296
    %318 = vmatpush.bf16.msra.mxu0 %v294
    %319 = vmatpush.bf16.msra.mxu0 %v292
    %320 = vmatpush.bf16.msra.mxu0 %v290
    %321 = vmatpush.bf16.msra.mxu0 %v288
    %322 = vmatpush.bf16.msra.mxu0 %v286
    %323 = vmatpush.bf16.msra.mxu0 %v284
    %324 = vmatmul.bf16.gmra.mxu0 %v94
    %v325 = vpop.f32.mrf.mxu0
    %v326 = vadd.f32 %v218, %v325
    %v327 = vpop.f32.mrf.mxu0
    %v328 = vadd.f32 %v220, %v327
    %329 = vdwg.mxu0
    %330 = vmatpush.bf16.msra.mxu0 %v299
    %331 = vmatpush.bf16.msra.mxu0 %v297
    %332 = vmatpush.bf16.msra.mxu0 %v295
    %333 = vmatpush.bf16.msra.mxu0 %v293
    %334 = vmatpush.bf16.msra.mxu0 %v291
    %335 = vmatpush.bf16.msra.mxu0 %v289
    %336 = vmatpush.bf16.msra.mxu0 %v287
    %337 = vmatpush.bf16.msra.mxu0 %v285
    %338 = vmatmul.bf16.gmra.mxu0 %v94
    %v339 = vpop.f32.mrf.mxu0
    %v340 = vadd.f32 %v232, %v339
    %v341 = vpop.f32.mrf.mxu0
    %v342 = vadd.f32 %v234, %v341
    %343 = vdwg.mxu0
    %v344 = vld [vmem:[%s4] sm:$0x3]
    %v346 = vperm.slane %v344, 0
    %v347 = vperm.slane %v344, 1
    %v350 = vadd.f32 %v326, %v346
    %v351 = vadd.f32 %v340, %v347
    %v352 = vadd.f32 %v328, %v346
    %v353 = vadd.f32 %v342, %v347
    %v354 = vxor.u32 %v350, 2147483648
    %v355 = vxor.u32 %v351, 2147483648
    %v356 = vxor.u32 %v352, 2147483648
    %v357 = vxor.u32 %v353, 2147483648
    %v358 = vmul.f32 %v354, 1.442695
    %v359 = vpow.pop %v358
    %v360 = vmul.f32 %v355, 1.442695
    %v361 = vpow.pop %v360
    %v362 = vmul.f32 %v356, 1.442695
    %v363 = vpow.pop %v362
    %v364 = vmul.f32 %v357, 1.442695
    %v365 = vpow.pop %v364
    %v366 = vadd.f32 %v359, 1.0
    %v367 = vadd.f32 %v361, 1.0
    %v368 = vadd.f32 %v363, 1.0
    %v369 = vadd.f32 %v365, 1.0
    %v370 = vrcp.pop %v366
    %v371 = vmul.f32 %v366, %v370
    %v372 = vsub.f32 1.0, %v371
    %v373 = vmul.f32 %v370, %v372
    %v374 = vadd.f32 %v370, %v373
    %vm375 = vweird.f32 %v366
    %vm376 = vweird.f32 %v370
    %vm377 = vmor %vm375, %vm376
    %v378 = vsel %vm377, %v370, %v374
    %v379 = vand.u32 2147483647, %v366
    %vm380 = vcmp.eq.f32.partialorder %v379, 8.507059e+37
    %v381 = vand.u32 %v366, 2147483648
    %v382 = vor.u32 1.1754944e-38, %v381
    %v383 = vsel %vm380, %v382, %v378
    %v384 = vmul.f32 1.0, %v383
    %v385 = vrcp.pop %v367
    %v386 = vmul.f32 %v367, %v385
    %v387 = vsub.f32 1.0, %v386
    %v388 = vmul.f32 %v385, %v387
    %v389 = vadd.f32 %v385, %v388
    %vm390 = vweird.f32 %v367
    %vm391 = vweird.f32 %v385
    %vm392 = vmor %vm390, %vm391
    %v393 = vsel %vm392, %v385, %v389
    %v394 = vand.u32 2147483647, %v367
    %vm395 = vcmp.eq.f32.partialorder %v394, 8.507059e+37
    %v396 = vand.u32 %v367, 2147483648
    %v397 = vor.u32 1.1754944e-38, %v396
    %v398 = vsel %vm395, %v397, %v393
    %v399 = vmul.f32 1.0, %v398
    %v400 = vrcp.pop %v368
    %v401 = vmul.f32 %v368, %v400
    %v402 = vsub.f32 1.0, %v401
    %v403 = vmul.f32 %v400, %v402
    %v404 = vadd.f32 %v400, %v403
    %vm405 = vweird.f32 %v368
    %vm406 = vweird.f32 %v400
    %vm407 = vmor %vm405, %vm406
    %v408 = vsel %vm407, %v400, %v404
    %v409 = vand.u32 2147483647, %v368
    %vm410 = vcmp.eq.f32.partialorder %v409, 8.507059e+37
    %v411 = vand.u32 %v368, 2147483648
    %v412 = vor.u32 1.1754944e-38, %v411
    %v413 = vsel %vm410, %v412, %v408
    %v414 = vmul.f32 1.0, %v413
    %v415 = vrcp.pop %v369
    %v416 = vmul.f32 %v369, %v415
    %v417 = vsub.f32 1.0, %v416
    %v418 = vmul.f32 %v415, %v417
    %v419 = vadd.f32 %v415, %v418
    %vm420 = vweird.f32 %v369
    %vm421 = vweird.f32 %v415
    %vm422 = vmor %vm420, %vm421
    %v423 = vsel %vm422, %v415, %v419
    %v424 = vand.u32 2147483647, %v369
    %vm425 = vcmp.eq.f32.partialorder %v424, 8.507059e+37
    %v426 = vand.u32 %v369, 2147483648
    %v427 = vor.u32 1.1754944e-38, %v426
    %v428 = vsel %vm425, %v427, %v423
    %v429 = vmul.f32 1.0, %v428
    %v430 = vmul.f32 %v90, %v384
    %v431 = vmul.f32 %v91, %v414
    %v432 = vmul.f32 %v92, %v399
    %v433 = vmul.f32 %v93, %v429
    %v434 = vadd.f32 %v430, %v432
    %v435 = vadd.f32 %v431, %v433
    %436 = vadd.xlane.f32.xlu0 %v434
    %v437 = vpop.xlane.xlu0 %436
    %438 = vadd.xlane.f32.xlu0 %v435
    %v439 = vpop.xlane.xlu0 %438
    %v440 = vrcp.pop 128.0
    %v441 = vmul.f32 128.0, %v440
    %v442 = vsub.f32 1.0, %v441
    %v443 = vmul.f32 %v440, %v442
    %v444 = vadd.f32 %v440, %v443
    %vm445 = vweird.f32 %v440
    %v446 = vsel %vm445, %v440, %v444
    %v447 = vmul.f32 %v437, %v446
    %v448 = vmul.f32 %v439, %v446
    %v449 = vsub.f32 %v434, %v447
    %v450 = vsub.f32 %v435, %v448
    %v451 = vmul.f32 %v449, %v449
    %v452 = vmul.f32 %v450, %v450
    %453 = vadd.xlane.f32.xlu0 %v451
    %v454 = vpop.xlane.xlu0 %453
    %455 = vadd.xlane.f32.xlu0 %v452
    %v456 = vpop.xlane.xlu0 %455
    %v457 = vmul.f32 %v454, %v446
    %v458 = vmul.f32 %v456, %v446
    %v459 = vadd.f32 %v457, 1e-05
    %v460 = vadd.f32 %v458, 1e-05
    %v461 = vrsqrt.pop %v459
    %v462 = vmul.f32 %v461, %v459
    %v463 = vmul.f32 %v462, %v461
    %v464 = vmul.f32 0.5, %v463
    %v465 = vsub.f32 1.5, %v464
    %v466 = vmul.f32 %v461, %v465
    %vm467 = vweird.f32 %v459
    %vm468 = vweird.f32 %v461
    %vm469 = vmor %vm467, %vm468
    %v470 = vsel %vm469, %v461, %v466
    %v471 = vrsqrt.pop %v460
    %v472 = vmul.f32 %v471, %v460
    %v473 = vmul.f32 %v472, %v471
    %v474 = vmul.f32 0.5, %v473
    %v475 = vsub.f32 1.5, %v474
    %v476 = vmul.f32 %v471, %v475
    %vm477 = vweird.f32 %v460
    %vm478 = vweird.f32 %v471
    %vm479 = vmor %vm477, %vm478
    %v480 = vsel %vm479, %v471, %v476
    %v481 = vmul.f32 %v449, %v470
    %v482 = vmul.f32 %v450, %v480
    %v483 = vld [vmem:[%s5] sm:$0x1]
    %v485 = vperm.slane %v483, 0
    %v487 = vmul.f32 %v481, %v485
    %v488 = vmul.f32 %v482, %v485
    %v489 = vld [vmem:[%s6] sm:$0x1]
    %v491 = vperm.slane %v489, 0
    %v493 = vadd.f32 %v487, %v491
    %v494 = vadd.f32 %v488, %v491
    %495 = vst [vmem:[#allocation10] sm:$0xff] %v493
    %496 = vst [vmem:[#allocation10 + $0x8] sm:$0xff] %v494
    // Predicated region
    $region46: #{tpu_custom_call.1} parent=1 // pred_check
      _
    $region47: #{tpu_custom_call.1} parent=1 // pred_check_branch
      %498 = sbr.rel (0) target = $region49
    $region48: #{tpu_custom_call.1} parent=1 // pred_region
      %500 = vsyncadd [#allocation4], 0
      %s501 = sshll.u32 [#allocation10], 4
      %s502 = int_to_ptr.vmem [resolvable:$true] %s501
      %s503 = sshll.u32 %s7, 4
      %s504 = int_to_ptr.hbm [resolvable:$true] %s503
      %509 = dma.vmem_to_hbm [thread:$0]  %s502, 256, %s504, [#allocation4], 128, 128, 8
    $region49: #{tpu_custom_call.1} parent=1 // pred_fallthru
      _
    // Predicated region
    $region50: #{tpu_custom_call.1} parent=1 // pred_check
      _
    $region51: #{tpu_custom_call.1} parent=1 // pred_check_branch
      %511 = sbr.rel (0) target = $region53
    $region52: #{tpu_custom_call.1} parent=1 // pred_region
      %513 = dma.done [#allocation4], 256
    $region53: #{tpu_custom_call.1} parent=1 // pred_fallthru
      _
    %514 = vsyncpa [#allocation3], 1
    %515 = vsyncpa [#allocation6], 1
    %516 = vsyncpa [#allocation9], 1
    %517 = vsyncpa [#allocation4], 1

</llo_original>
